<compile_context>
chip_gen: v5e
topology: v5e:2x2
jax: 0.10.0
libtpu: 0.0.40
codegen_flags: <defaults>
</compile_context>

<pallas_src>
import functools

import jax
import jax.numpy as jnp
from jax.experimental import pallas as pl
from jax.experimental.pallas import tpu as pltpu

LANE_PAD = 128    # padded width of the logits / output (lane axis)
NEG_BIG = -1e30   # finite "-inf": exp(NEG_BIG - m) underflows to exactly 0 in f32


def _stacking_kernel(x_ref, w_ref, b_ref, o_ref):
    # Single fused affine layer (all three linears collapsed offline), f32 MXU.
    logits = jnp.dot(x_ref[...], w_ref[...],
                     preferred_element_type=jnp.float32) + b_ref[...]

    # Numerically stable softmax over the (padded) lane axis == torch dim=1.
    # Padded columns have bias -1e30 -> exp() == 0 -> exactly zero probability.
    m = jnp.max(logits, axis=-1, keepdims=True)
    e = jnp.exp(logits - m)
    denom = jnp.sum(e, axis=-1, keepdims=True)
    o_ref[...] = (e / denom).astype(o_ref.dtype)   # exact normalization


def _round_up(n, m):
    return ((n + m - 1) // m) * m


def prepare_params(params):
    """Collapse the 3 torch-layout linears into one padded affine map (done once)."""
    hp = jax.lax.Precision.HIGHEST
    w1t = params["w1"].T  # (in, hidden)
    w2t = params["w2"].T  # (hidden, hidden)
    w3t = params["w3"].T  # (hidden, target)
    w_eff = jnp.dot(jnp.dot(w1t, w2t, precision=hp), w3t, precision=hp)      # (in, target)
    b_eff = jnp.dot(jnp.dot(params["b1"], w2t, precision=hp) + params["b2"],
                    w3t, precision=hp) + params["b3"]                         # (target,)

    target = w_eff.shape[1]
    assert target <= LANE_PAD
    pad = LANE_PAD - target
    # Zero-pad weight columns; padded bias columns get a huge negative value so
    # the softmax assigns the padded classes exactly zero probability.
    w_pad = jnp.pad(w_eff, ((0, 0), (0, pad))).astype(jnp.float32)
    b_pad = jnp.pad(b_eff, (0, pad), constant_values=NEG_BIG)
    b_pad = b_pad.reshape(1, LANE_PAD).astype(jnp.float32)
    return w_pad, b_pad, target


@functools.partial(jax.jit, static_argnames=("target", "max_batch_tile", "out_dtype"))
def prob_space_stacking_forward(x, w_eff, b_eff, *, target,
                                max_batch_tile=2048, out_dtype=jnp.float32):
    """x: (B, in_features) float32. w_eff/b_eff from prepare_params."""
    B, F = x.shape
    lane = w_eff.shape[1]

    # Batch tile: multiple of 8 sublanes; as big as useful (the kernel is
    # HBM-bound with ~0.35us fixed overhead per grid step), but capped so that
    # both v7x TensorCores get work once B is large enough.
    tb = min(max_batch_tile, _round_up(max(B, 1), 8))
    if B >= 16:
        tb = min(tb, _round_up(pl.cdiv(B, 2), 8))
    tb = _round_up(tb, 8)
    grid = (pl.cdiv(B, tb),)

    out_bytes = jnp.dtype(out_dtype).itemsize
    cost = pl.CostEstimate(
        flops=2 * B * F * lane,
        transcendentals=B * lane,
        bytes_accessed=B * (F * 4 + lane * out_bytes) + (F * lane + lane) * 4,
    )

    out = pl.pallas_call(
        _stacking_kernel,
        out_shape=jax.ShapeDtypeStruct((B, lane), out_dtype),
        grid=grid,
        in_specs=[
            pl.BlockSpec((tb, F), lambda i: (i, 0)),     # x tile, pipelined over batch
            pl.BlockSpec((F, lane), lambda i: (0, 0)),   # fused weight, VMEM-resident
            pl.BlockSpec((1, lane), lambda i: (0, 0)),   # fused bias, VMEM-resident
        ],
        out_specs=pl.BlockSpec((tb, lane), lambda i: (i, 0)),
        compiler_params=pltpu.CompilerParams(
            dimension_semantics=("parallel",),
        ),
        cost_estimate=cost,
    )(x, w_eff, b_eff)

    # Padded classes carry exactly zero probability; slice them off to match the
    # torch (B, target) output.  Consumers that can accept the lane-dense
    # 128-wide layout may skip this slice and save an extra HBM pass.
    return out[:, :target]


def init_params(key, in_features, hidden_features, target_size):
    ks = jax.random.split(key, 6)
    s1 = 1.0 / jnp.sqrt(in_features)
    s2 = 1.0 / jnp.sqrt(hidden_features)
    return {
        "w1": jax.random.uniform(ks[0], (hidden_features, in_features), jnp.float32, -s1, s1),
        "b1": jax.random.uniform(ks[1], (hidden_features,), jnp.float32, -s1, s1),
        "w2": jax.random.uniform(ks[2], (hidden_features, hidden_features), jnp.float32, -s2, s2),
        "b2": jax.random.uniform(ks[3], (hidden_features,), jnp.float32, -s2, s2),
        "w3": jax.random.uniform(ks[4], (target_size, hidden_features), jnp.float32, -s2, s2),
        "b3": jax.random.uniform(ks[5], (target_size,), jnp.float32, -s2, s2),
    }


def reference_forward(x, p):
    hp = jax.lax.Precision.HIGHEST
    h = jnp.dot(x, p["w1"].T, precision=hp) + p["b1"]
    h = jnp.dot(h, p["w2"].T, precision=hp) + p["b2"]
    logits = jnp.dot(h, p["w3"].T, precision=hp) + p["b3"]
    return jax.nn.softmax(logits, axis=1)


if __name__ == "__main__":
    # ModelConfig analog: 4 stacked base models, 8 target classes -> in_features = 32.
    num_stacked_features = 4
    target_size = 8
    in_features = num_stacked_features * target_size  # 32
    hidden_features = 128                             # hardcoded in the module
    batch = 2

    key = jax.random.PRNGKey(0)
    k_x, k_p = jax.random.split(key)
    x = jax.random.normal(k_x, (batch, in_features), dtype=jnp.float32)
    params = init_params(k_p, in_features, hidden_features, target_size)

    # Hoisted, once-per-model preparation (collapse + pad + transpose).
    w_eff, b_eff, target = prepare_params(params)

    out = prob_space_stacking_forward(x, w_eff, b_eff, target=target)
    out = jax.block_until_ready(out)

    ref = reference_forward(x, params)
    assert out.shape == (batch, target_size)
    assert bool(jnp.all(jnp.isfinite(out)))
    # Exact in-kernel divide -> rows normalize to 1 up to f32 rounding.
    assert jnp.allclose(jnp.sum(out, axis=1), 1.0, atol=1e-4)
    # f32 operands throughout -> only fusion/associativity-level deviations.
    assert jnp.allclose(out, ref, atol=2e-3, rtol=2e-2)

    print("KERNEL_OK")
</pallas_src>

<mosaic_0001>
module attributes {stable_mosaic.version = 11 : i64} {
  func.func @_stacking_kernel(%arg0: i32, %arg1: memref<8x32xf32, #tpu.memory_space<vmem>>, %arg2: memref<32x128xf32, #tpu.memory_space<vmem>>, %arg3: memref<1x128xf32, #tpu.memory_space<vmem>>, %arg4: memref<8x128xf32, #tpu.memory_space<vmem>>) attributes {dimension_semantics = [#tpu.dimension_semantics<parallel>], iteration_bounds = array<i64: 1>, scalar_prefetch = 0 : i64, scratch_operands = 0 : i64, tpu.core_type = #tpu.core_type<tc>, window_params = [{transform_indices = @transform_0, window_bounds = array<i64: 8, 32>}, {pipeline_mode = #tpu.pipeline_mode<synchronous>, transform_indices = @transform_1, window_bounds = array<i64: 32, 128>}, {pipeline_mode = #tpu.pipeline_mode<synchronous>, transform_indices = @transform_2, window_bounds = array<i64: 1, 128>}, {transform_indices = @transform_3, window_bounds = array<i64: 8, 128>}]} {
    %c0 = arith.constant 0 : index
    %c0_0 = arith.constant 0 : index
    %0 = vector.load %arg1[%c0, %c0_0] : memref<8x32xf32, #tpu.memory_space<vmem>>, vector<8x32xf32>
    %c0_1 = arith.constant 0 : index
    %c0_2 = arith.constant 0 : index
    %1 = vector.load %arg2[%c0_1, %c0_2] : memref<32x128xf32, #tpu.memory_space<vmem>>, vector<32x128xf32>
    %cst = arith.constant dense<0.000000e+00> : vector<8x128xf32>
    %2 = tpu.matmul %0, %1, %cst {dimension_numbers = #tpu.dot_dimension_numbers<[1], [0], [0], [1], [0, 0, 1, 1], [], []>} : vector<8x32xf32>, vector<32x128xf32>, vector<8x128xf32> -> vector<8x128xf32>
    %c0_3 = arith.constant 0 : index
    %c0_4 = arith.constant 0 : index
    %3 = vector.load %arg3[%c0_3, %c0_4] : memref<1x128xf32, #tpu.memory_space<vmem>>, vector<1x128xf32>
    %4 = vector.broadcast %3 : vector<1x128xf32> to vector<8x128xf32>
    %5 = arith.addf %2, %4 : vector<8x128xf32>
    %cst_5 = arith.constant dense<0xFF800000> : vector<8xf32>
    %6 = vector.multi_reduction <maximumf>, %5, %cst_5 [1] : vector<8x128xf32> to vector<8xf32>
    %7 = vector.shape_cast %6 : vector<8xf32> to vector<8x1xf32>
    %8 = vector.broadcast %7 : vector<8x1xf32> to vector<8x128xf32>
    %9 = arith.subf %5, %8 : vector<8x128xf32>
    %10 = math.exp %9 : vector<8x128xf32>
    %cst_6 = arith.constant dense<0.000000e+00> : vector<8xf32>
    %11 = vector.multi_reduction <add>, %10, %cst_6 [1] : vector<8x128xf32> to vector<8xf32>
    %12 = vector.shape_cast %11 : vector<8xf32> to vector<8x1xf32>
    %13 = vector.broadcast %12 : vector<8x1xf32> to vector<8x128xf32>
    %14 = arith.divf %10, %13 : vector<8x128xf32>
    %c0_7 = arith.constant 0 : index
    %c0_8 = arith.constant 0 : index
    %15 = vector.load %arg4[%c0_7, %c0_8] : memref<8x128xf32, #tpu.memory_space<vmem>>, vector<8x128xf32>
    tpu.vector_store %arg4[%c0_7, %c0_8], %14 {strides = array<i32>} : memref<8x128xf32, #tpu.memory_space<vmem>>, vector<8x128xf32>,
    return
  }
  func.func @transform_0(%arg0: i32) -> (i32, i32) {
    %c0_i32 = arith.constant 0 : i32
    %c0_i32_0 = arith.constant 0 : i32
    return %arg0, %c0_i32 : i32, i32
  }
  func.func @transform_1(%arg0: i32) -> (i32, i32) {
    %c0_i32 = arith.constant 0 : i32
    %c0_i32_0 = arith.constant 0 : i32
    %c0_i32_1 = arith.constant 0 : i32
    return %c0_i32, %c0_i32_0 : i32, i32
  }
  func.func @transform_2(%arg0: i32) -> (i32, i32) {
    %c0_i32 = arith.constant 0 : i32
    %c0_i32_0 = arith.constant 0 : i32
    %c0_i32_1 = arith.constant 0 : i32
    return %c0_i32, %c0_i32_0 : i32, i32
  }
  func.func @transform_3(%arg0: i32) -> (i32, i32) {
    %c0_i32 = arith.constant 0 : i32
    %c0_i32_0 = arith.constant 0 : i32
    return %arg0, %c0_i32 : i32, i32
  }
}

</mosaic_0001>

<llo_original>
// kernel: prob_space_stacking_forward.1
$region0: #{prob_space_stacking_forward.1}
  #allocation0 [shape = 'u32[]', space=smem, size = 0x4, offset = 0x4, fixed_abs, tag = 'smem constant byte address 0x4 - core index']
  #allocation1 [shape = 'u32[72,128]{1,0:T(1,128)}', space=vmem, size = 0x9000, scoped, tag = 'internal scratch']
  %s0 = inlined_call_operand.hbm [shape: f32[2,32], index: 0, kind: input, shape index: {}]
  %s1 = inlined_call_operand.hbm [shape: f32[32,128], index: 1, kind: input, shape index: {}]
  %s2 = inlined_call_operand.vmem [shape: f32[1,128], index: 2, kind: input, shape index: {}]
  %s3 = inlined_call_operand.hbm [shape: f32[2,128], index: 3, kind: output, shape index: {}]
  %s4 = sld [smem:[#allocation0]]
  $region30: #{prob_space_stacking_forward.1} parent=0
    _
  %s6 = ssub.s32 1, %s4
  %s7 = scalar_select 0, %s6, %s4
  $region1: #{prob_space_stacking_forward.1} parent=0
    #allocation2 [shape = 'u8[4096]{0}', space=vmem, size = 0x1000, scoped, tag = 'input window, operand 0, single buffered']
    #allocation3 [shape = 's32[1]{0}', space=sflag, size = 0x4, scoped, tag = 'scoped memory for prob_space_stacking_forward.1']
    #allocation4 [shape = 's32[1]{0}', space=sflag, size = 0x4, scoped, tag = 'scoped memory for prob_space_stacking_forward.1']
    #allocation5 [shape = 'u8[16384]{0}', space=vmem, size = 0x4000, scoped, tag = 'input window, operand 1, single buffered']
    #allocation6 [shape = 's32[1]{0}', space=sflag, size = 0x4, scoped, tag = 'scoped memory for prob_space_stacking_forward.1']
    #allocation7 [shape = 'u8[4096]{0}', space=vmem, size = 0x1000, scoped, tag = 'output window, operand 0, single buffered']
    %8 = vsyncpa [#allocation3], 0
    %9 = vsyncpa [#allocation6], 0
    %10 = vsyncpa [#allocation4], 0
    // Predicated region
    $region2: #{prob_space_stacking_forward.1} parent=1 // pred_check
      _
    $region3: #{prob_space_stacking_forward.1} parent=1 // pred_check_branch
      %12 = sbr.rel (0) target = $region5
    $region4: #{prob_space_stacking_forward.1} parent=1 // pred_region
      %14 = vsyncadd [#allocation3], 96
      %s15 = sshll.u32 %s0, 4
      %s16 = int_to_ptr.hbm [resolvable:$true] %s15
      %s17 = sshll.u32 [#allocation2], 4
      %s18 = int_to_ptr.vmem [resolvable:$true] %s17
      %23 = dma.hbm_to_vmem [thread:$0]  %s16, 32, %s18, [#allocation3], 32, 32, 2
    $region5: #{prob_space_stacking_forward.1} parent=1 // pred_fallthru
      _
    // Predicated region
    $region6: #{prob_space_stacking_forward.1} parent=1 // pred_check
      _
    $region7: #{prob_space_stacking_forward.1} parent=1 // pred_check_branch
      %25 = sbr.rel (0) target = $region9
    $region8: #{prob_space_stacking_forward.1} parent=1 // pred_region
      %27 = vsyncadd [#allocation6], 0
      %s28 = sshll.u32 %s1, 4
      %s29 = int_to_ptr.hbm [resolvable:$true] %s28
      %s30 = sshll.u32 [#allocation5], 4
      %s31 = int_to_ptr.vmem [resolvable:$true] %s30
      %36 = dma.hbm_to_vmem [thread:$0]  %s29, 512, %s31, [#allocation6], 128, 128, 8
    $region9: #{prob_space_stacking_forward.1} parent=1 // pred_fallthru
      _
    // Predicated region
    $region10: #{prob_space_stacking_forward.1} parent=1 // pred_check
      _
    $region11: #{prob_space_stacking_forward.1} parent=1 // pred_check_branch
      %38 = sbr.rel (0) target = $region13
    $region12: #{prob_space_stacking_forward.1} parent=1 // pred_region
      _
    $region13: #{prob_space_stacking_forward.1} parent=1 // pred_fallthru
      _
    // Predicated region
    $region14: #{prob_space_stacking_forward.1} parent=1 // pred_check
      _
    $region15: #{prob_space_stacking_forward.1} parent=1 // pred_check_branch
      %40 = sbr.rel (0) target = $region17
    $region16: #{prob_space_stacking_forward.1} parent=1 // pred_region
      %42 = dma.done [#allocation3], 128
    $region17: #{prob_space_stacking_forward.1} parent=1 // pred_fallthru
      _
    // Predicated region
    $region18: #{prob_space_stacking_forward.1} parent=1 // pred_check
      _
    $region19: #{prob_space_stacking_forward.1} parent=1 // pred_check_branch
      %44 = sbr.rel (0) target = $region21
    $region20: #{prob_space_stacking_forward.1} parent=1 // pred_region
      %46 = dma.done [#allocation6], 512
    $region21: #{prob_space_stacking_forward.1} parent=1 // pred_fallthru
      _
    %v47 = vld [vmem:[#allocation2] sm:$0xff]
    %v48 = vld [vmem:[#allocation5] sm:$0xff]
    %v49 = vld [vmem:[#allocation5 + $0x8] sm:$0xff]
    %v50 = vld [vmem:[#allocation5 + $0x10] sm:$0xff]
    %v51 = vld [vmem:[#allocation5 + $0x18] sm:$0xff]
    %v52 = vld [vmem:[%s2] sm:$0x1]
    %v54 = vperm.slane %v52, 0
    %vm56 = vcmask 261120
    %v58 = vsel %vm56, %v47, 0
    %60 = vmatpush.msra.mxu0 0.0
    %61 = vmatpush.msra.mxu0 0.0
    %62 = vmatpush.msra.mxu0 0.0
    %63 = vmatpush.msra.mxu0 0.0
    %64 = vmatpush.msra.mxu0 0.0
    %65 = vmatpush.msra.mxu0 0.0
    %66 = vmatpush.msra.mxu0 0.0
    %67 = vmatpush.msra.mxu0 0.0
    %68 = vmatpush.msra.mxu0 0.0
    %69 = vmatpush.msra.mxu0 0.0
    %70 = vmatpush.msra.mxu0 0.0
    %71 = vmatpush.msra.mxu0 0.0
    %72 = vmatpush.msra.mxu0 %v51
    %73 = vmatpush.msra.mxu0 %v50
    %74 = vmatpush.msra.mxu0 %v49
    %75 = vmatpush.msra.mxu0 %v48
    %76 = vmatmul.f32.gmra.mxu0 %v58
    %v77 = vpop.f32.mrf.mxu0
    %v78 = vadd.f32 %v54, %v77
    %79 = vdwg.mxu0
    %80 = vmax.xlane.f32.xlu0 %v78
    %v81 = vpop.xlane.xlu0 %80
    %v82 = vsub.f32 %v78, %v81
    %v83 = vmul.f32 %v82, 1.442695
    %v84 = vpow.pop %v83
    %85 = vadd.xlane.f32.xlu0 %v84
    %v86 = vpop.xlane.xlu0 %85
    %v87 = vrcp.pop %v86
    %v88 = vmul.f32 %v86, %v87
    %v89 = vsub.f32 1.0, %v88
    %v90 = vmul.f32 %v87, %v89
    %v91 = vadd.f32 %v87, %v90
    %vm92 = vweird.f32 %v86
    %vm93 = vweird.f32 %v87
    %vm94 = vmor %vm92, %vm93
    %v95 = vsel %vm94, %v87, %v91
    %v96 = vand.u32 2147483647, %v86
    %vm97 = vcmp.eq.f32.partialorder %v96, 8.507059e+37
    %v98 = vand.u32 %v86, 2147483648
    %v99 = vor.u32 1.1754944e-38, %v98
    %v100 = vsel %vm97, %v99, %v95
    %v101 = vmul.f32 %v84, %v100
    %102 = vst [vmem:[#allocation7] sm:$0xff] %v101
    // Predicated region
    $region22: #{prob_space_stacking_forward.1} parent=1 // pred_check
      _
    $region23: #{prob_space_stacking_forward.1} parent=1 // pred_check_branch
      %104 = sbr.rel (0) target = $region25
    $region24: #{prob_space_stacking_forward.1} parent=1 // pred_region
      %106 = vsyncadd [#allocation4], 96
      %s107 = sshll.u32 [#allocation7], 4
      %s108 = int_to_ptr.vmem [resolvable:$true] %s107
      %s109 = sshll.u32 %s3, 4
      %s110 = int_to_ptr.hbm [resolvable:$true] %s109
      %115 = dma.vmem_to_hbm [thread:$0]  %s108, 32, %s110, [#allocation4], 32, 32, 2
    $region25: #{prob_space_stacking_forward.1} parent=1 // pred_fallthru
      _
    // Predicated region
    $region26: #{prob_space_stacking_forward.1} parent=1 // pred_check
      _
    $region27: #{prob_space_stacking_forward.1} parent=1 // pred_check_branch
      %117 = sbr.rel (0) target = $region29
    $region28: #{prob_space_stacking_forward.1} parent=1 // pred_region
      %119 = dma.done [#allocation4], 128
    $region29: #{prob_space_stacking_forward.1} parent=1 // pred_fallthru
      _
    %120 = vsyncpa [#allocation3], 1
    %121 = vsyncpa [#allocation6], 1
    %122 = vsyncpa [#allocation4], 1

</llo_original>
